<compile_context>
chip_gen: v5e
topology: v5e:2x2
jax: 0.10.0
libtpu: 0.0.40
codegen_flags: <defaults>
</compile_context>

<pallas_src>
import functools

import numpy as np

import jax
import jax.numpy as jnp
from jax.experimental import pallas as pl
from jax.experimental.pallas import tpu as pltpu

BN_EPS = 1e-5
_VMEM = pl.BlockSpec(memory_space=pltpu.MemorySpace.VMEM)
_CPARAMS = pltpu.CompilerParams(vmem_limit_bytes=48 * 1024 * 1024)


# ----------------------- roll convention probe ------------------------------ #

_ROLL_SIGN = None


def _roll_sign():
    """Returns +1 if pltpu.roll follows jnp.roll semantics, else -1."""
    global _ROLL_SIGN
    if _ROLL_SIGN is None:
        def k(x_ref, o_ref):
            o_ref[...] = pltpu.roll(x_ref[...], 1, axis=0)

        x = jnp.broadcast_to(jnp.arange(8, dtype=jnp.float32)[:, None], (8, 128))
        out = pl.pallas_call(
            k,
            out_shape=jax.ShapeDtypeStruct((8, 128), jnp.float32),
            in_specs=[_VMEM],
            out_specs=_VMEM,
            compiler_params=_CPARAMS,
        )(x)
        # jnp.roll(x, 1, axis=0)[1] == x[0] == 0
        _ROLL_SIGN = 1 if float(out[1, 0]) == 0.0 else -1
    return _ROLL_SIGN


# ----------------------------- Pallas kernels ------------------------------- #

def _conv3x3_bn_relu(y, w_bf, b, g, be, *, N, H, W):
    """Fused 3x3 conv (pad=1) + bias + BatchNorm(batch stats) + ReLU.

    y:    (M, Cin)  f32, M = N*H*W flattened NHWC
    w_bf: (9*Cin, Cout) bf16 (tap-major: row = k*Cin + ci, k = dy*3+dx)
    b/g/be: (1, Cout) f32
    returns (M, Cout) f32
    """
    M, _ = y.shape
    sign = _roll_sign()

    h_pos = w_pos = None
    if H > 1 or W > 1:
        idx = jax.lax.broadcasted_iota(jnp.int32, (M, 1), 0)
        h_pos = (idx // W) % H
        w_pos = idx % W

    taps = []
    for k in range(9):
        sy, sx = k // 3 - 1, k % 3 - 1
        # taps that are entirely out of bounds (e.g. at the 1x1 level)
        if (sy != 0 and H == 1) or (sx != 0 and W == 1):
            taps.append(jnp.zeros_like(y))
            continue
        d = sy * W + sx  # flattened-index shift; stays inside one batch element
        t = y if d == 0 else pltpu.roll(y, (sign * -d) % M, axis=0)
        cond = None
        if sy != 0:
            cond = (h_pos + sy >= 0) & (h_pos + sy < H)
        if sx != 0:
            cw = (w_pos + sx >= 0) & (w_pos + sx < W)
            cond = cw if cond is None else (cond & cw)
        if cond is not None:
            t = jnp.where(cond, t, 0.0)
        taps.append(t)

    patches = jnp.concatenate(taps, axis=-1).astype(jnp.bfloat16)  # (M, 9*Cin)
    z = jnp.dot(patches, w_bf, preferred_element_type=jnp.float32) + b

    # BatchNorm2d (training mode): per-channel mean / biased var over (N,H,W),
    # computed in a single pass (sum and sum of squares).
    inv_m = jnp.float32(1.0 / M)
    mean = jnp.sum(z, axis=0, keepdims=True) * inv_m
    var = jnp.maximum(jnp.sum(z * z, axis=0, keepdims=True) * inv_m - mean * mean, 0.0)
    out = (z - mean) * jax.lax.rsqrt(var + BN_EPS) * g + be
    return jnp.maximum(out, 0.0)


def _vgg_block_kernel(x_ref, w1_ref, b1_ref, g1_ref, be1_ref,
                      w2_ref, b2_ref, g2_ref, be2_ref, o_ref, *, N, H, W):
    y1 = _conv3x3_bn_relu(x_ref[...], w1_ref[...], b1_ref[...], g1_ref[...],
                          be1_ref[...], N=N, H=H, W=W)
    y2 = _conv3x3_bn_relu(y1, w2_ref[...], b2_ref[...], g2_ref[...],
                          be2_ref[...], N=N, H=H, W=W)
    o_ref[...] = y2


def _vgg_block_final_kernel(x_ref, w1_ref, b1_ref, g1_ref, be1_ref,
                            w2_ref, b2_ref, g2_ref, be2_ref,
                            wf_ref, bf_ref, o_ref, *, N, H, W):
    """conv0_4 block fused with the final 1x1 conv + sigmoid epilogue."""
    y1 = _conv3x3_bn_relu(x_ref[...], w1_ref[...], b1_ref[...], g1_ref[...],
                          be1_ref[...], N=N, H=H, W=W)
    y2 = _conv3x3_bn_relu(y1, w2_ref[...], b2_ref[...], g2_ref[...],
                          be2_ref[...], N=N, H=H, W=W)
    z = jnp.sum(y2 * wf_ref[...], axis=-1, keepdims=True) + bf_ref[...]
    o_ref[...] = 1.0 / (1.0 + jnp.exp(-z))


# ------------------------------- wrappers ----------------------------------- #

def vgg_block(x, p):
    """x: (N,H,W,Cin) -> (N,H,W,Cout). One fused Pallas kernel."""
    n, h, w, cin = x.shape
    cmid = p["w1"].shape[-1]
    cout = p["w2"].shape[-1]
    m = n * h * w
    kern = functools.partial(_vgg_block_kernel, N=n, H=h, W=w)
    out = pl.pallas_call(
        kern,
        out_shape=jax.ShapeDtypeStruct((m, cout), jnp.float32),
        in_specs=[_VMEM] * 9,
        out_specs=_VMEM,
        compiler_params=_CPARAMS,
    )(x.reshape(m, cin).astype(jnp.float32),
      p["w1"].reshape(9 * cin, cmid).astype(jnp.bfloat16),
      p["b1"].reshape(1, cmid), p["g1"].reshape(1, cmid), p["be1"].reshape(1, cmid),
      p["w2"].reshape(9 * cmid, cout).astype(jnp.bfloat16),
      p["b2"].reshape(1, cout), p["g2"].reshape(1, cout), p["be2"].reshape(1, cout))
    return out.reshape(n, h, w, cout)


def vgg_block_final(x, p, wf, bf):
    """conv0_4 block + final 1x1 conv + sigmoid, fused into one kernel."""
    n, h, w, cin = x.shape
    cmid = p["w1"].shape[-1]
    cout = p["w2"].shape[-1]
    m = n * h * w
    kern = functools.partial(_vgg_block_final_kernel, N=n, H=h, W=w)
    out = pl.pallas_call(
        kern,
        out_shape=jax.ShapeDtypeStruct((m, 1), jnp.float32),
        in_specs=[_VMEM] * 11,
        out_specs=_VMEM,
        compiler_params=_CPARAMS,
    )(x.reshape(m, cin).astype(jnp.float32),
      p["w1"].reshape(9 * cin, cmid).astype(jnp.bfloat16),
      p["b1"].reshape(1, cmid), p["g1"].reshape(1, cmid), p["be1"].reshape(1, cmid),
      p["w2"].reshape(9 * cmid, cout).astype(jnp.bfloat16),
      p["b2"].reshape(1, cout), p["g2"].reshape(1, cout), p["be2"].reshape(1, cout),
      wf.reshape(1, cout), bf.reshape(1, 1))
    return out.reshape(n, h, w, 1)


# ------------------------------- JAX glue ----------------------------------- #

def maxpool2x2(x):
    n, h, w, c = x.shape
    return x.reshape(n, h // 2, 2, w // 2, 2, c).max(axis=(2, 4))


def _interp_matrix(n_in, n_out):
    """Static (n_out, n_in) bilinear matrix, align_corners=True."""
    if n_in == 1:
        return jnp.asarray(np.ones((n_out, 1), np.float32))
    src = np.arange(n_out, dtype=np.float64) * (n_in - 1) / (n_out - 1)
    i0 = np.clip(np.floor(src).astype(np.int64), 0, n_in - 1)
    i1 = np.clip(i0 + 1, 0, n_in - 1)
    frac = src - i0
    a = np.zeros((n_out, n_in), np.float64)
    a[np.arange(n_out), i0] += 1.0 - frac
    a[np.arange(n_out), i1] += frac
    return jnp.asarray(a.astype(np.float32))


def upsample_bilinear_ac(x):
    """nn.Upsample(scale_factor=2, mode='bilinear', align_corners=True), NHWC."""
    n, h, w, c = x.shape
    ay = _interp_matrix(h, 2 * h)
    ax = _interp_matrix(w, 2 * w)
    y = jnp.einsum('oh,nhwc->nowc', ay, x)
    return jnp.einsum('pw,nowc->nopc', ax, y)


def cat(xs):
    return jnp.concatenate(xs, axis=-1)  # channel dim (NHWC)


# ------------------------------ parameters ---------------------------------- #

def make_vgg_params(key, cin, cmid, cout):
    k1, k2, k3, k4 = jax.random.split(key, 4)
    std1 = (2.0 / (9 * cin)) ** 0.5
    std2 = (2.0 / (9 * cmid)) ** 0.5
    return dict(
        w1=jax.random.normal(k1, (3, 3, cin, cmid), jnp.float32) * std1,
        b1=jax.random.normal(k2, (cmid,), jnp.float32) * 0.01,
        g1=jnp.ones((cmid,), jnp.float32),
        be1=jnp.zeros((cmid,), jnp.float32),
        w2=jax.random.normal(k3, (3, 3, cmid, cout), jnp.float32) * std2,
        b2=jax.random.normal(k4, (cout,), jnp.float32) * 0.01,
        g2=jnp.ones((cout,), jnp.float32),
        be2=jnp.zeros((cout,), jnp.float32),
    )


def make_params(key):
    nb = [32, 64, 128, 256, 512]
    dims = {
        "conv0_0": (3, nb[0], nb[0]),
        "conv1_0": (nb[0], nb[1], nb[1]),
        "conv2_0": (nb[1], nb[2], nb[2]),
        "conv3_0": (nb[2], nb[3], nb[3]),
        "conv4_0": (nb[3], nb[4], nb[4]),
        "conv0_1": (nb[0] + nb[1], nb[0], nb[0]),
        "conv1_1": (nb[1] + nb[2], nb[1], nb[1]),
        "conv2_1": (nb[2] + nb[3], nb[2], nb[2]),
        "conv3_1": (nb[3] + nb[4], nb[3], nb[3]),
        "conv0_2": (nb[0] * 2 + nb[1], nb[0], nb[0]),
        "conv1_2": (nb[1] * 2 + nb[2], nb[1], nb[1]),
        "conv2_2": (nb[2] * 2 + nb[3], nb[2], nb[2]),
        "conv0_3": (nb[0] * 3 + nb[1], nb[0], nb[0]),
        "conv1_3": (nb[1] * 3 + nb[2], nb[1], nb[1]),
        "conv0_4": (nb[0] * 4 + nb[1], nb[0], nb[0]),
    }
    params = {}
    keys = jax.random.split(key, len(dims) + 2)
    for k_sub, (name, (ci, cm, co)) in zip(keys[:len(dims)], sorted(dims.items())):
        params[name] = make_vgg_params(k_sub, ci, cm, co)
    params["final_w"] = (jax.random.normal(keys[-2], (1, 1, nb[0], 1), jnp.float32)
                         * (1.0 / nb[0]) ** 0.5)
    params["final_b"] = jax.random.normal(keys[-1], (1,), jnp.float32) * 0.01
    return params


# ------------------------------ full forward -------------------------------- #

@jax.jit
def unetpp_forward(x_nchw, params):
    x = jnp.transpose(x_nchw, (0, 2, 3, 1))  # NCHW -> NHWC
    vgg = lambda name, inp: vgg_block(inp, params[name])
    pool, up = maxpool2x2, upsample_bilinear_ac

    x0_0 = vgg("conv0_0", x)
    x1_0 = vgg("conv1_0", pool(x0_0))
    x0_1 = vgg("conv0_1", cat([x0_0, up(x1_0)]))
    x2_0 = vgg("conv2_0", pool(x1_0))
    x1_1 = vgg("conv1_1", cat([x1_0, up(x2_0)]))
    x0_2 = vgg("conv0_2", cat([x0_0, x0_1, up(x1_1)]))
    x3_0 = vgg("conv3_0", pool(x2_0))
    x2_1 = vgg("conv2_1", cat([x2_0, up(x3_0)]))
    x1_2 = vgg("conv1_2", cat([x1_0, x1_1, up(x2_1)]))
    x0_3 = vgg("conv0_3", cat([x0_0, x0_1, x0_2, up(x1_2)]))
    x4_0 = vgg("conv4_0", pool(x3_0))
    x3_1 = vgg("conv3_1", cat([x3_0, up(x4_0)]))
    x2_2 = vgg("conv2_2", cat([x2_0, x2_1, up(x3_1)]))
    x1_3 = vgg("conv1_3", cat([x1_0, x1_1, x1_2, up(x2_2)]))

    # conv0_4 + final 1x1 conv + sigmoid, fused in a single kernel.
    out = vgg_block_final(cat([x0_0, x0_1, x0_2, x0_3, up(x1_3)]),
                          params["conv0_4"], params["final_w"], params["final_b"])
    return jnp.transpose(out, (0, 3, 1, 2))  # back to NCHW


if __name__ == "__main__":
    # Resolve pltpu.roll's shift convention once, eagerly, before tracing.
    _roll_sign()

    key = jax.random.PRNGKey(0)
    k_x, k_p = jax.random.split(key)
    # NCHW input, 3 channels as required by conv0_0; 16x16 so the deepest level is 1x1.
    x = jax.random.normal(k_x, (2, 3, 16, 16), jnp.float32)
    params = make_params(k_p)

    out = unetpp_forward(x, params)
    out = jax.block_until_ready(out)

    assert out.shape == (2, 1, 16, 16), out.shape
    assert bool(jnp.all(jnp.isfinite(out)))
    assert bool(jnp.all((out >= 0.0) & (out <= 1.0)))  # sigmoid range
    print("KERNEL_OK")
</pallas_src>

<mosaic_0001>
module attributes {stable_mosaic.version = 11 : i64} {
  func.func @k(%arg0: memref<8x128xf32, #tpu.memory_space<vmem>>, %arg1: memref<8x128xf32, #tpu.memory_space<vmem>>) attributes {dimension_semantics = [], scalar_prefetch = 0 : i64, scratch_operands = 0 : i64, tpu.core_type = #tpu.core_type<tc>} {
    %c0 = arith.constant 0 : index
    %c0_0 = arith.constant 0 : index
    %0 = vector.load %arg0[%c0, %c0_0] : memref<8x128xf32, #tpu.memory_space<vmem>>, vector<8x128xf32>
    %c1_i32 = arith.constant 1 : i32
    %1 = tpu.dynamic_rotate %0 by %c1_i32 dim 0 : vector<8x128xf32>, i32 -> vector<8x128xf32>
    %c0_1 = arith.constant 0 : index
    %c0_2 = arith.constant 0 : index
    %2 = vector.load %arg1[%c0_1, %c0_2] : memref<8x128xf32, #tpu.memory_space<vmem>>, vector<8x128xf32>
    tpu.vector_store %arg1[%c0_1, %c0_2], %1 {strides = array<i32>} : memref<8x128xf32, #tpu.memory_space<vmem>>, vector<8x128xf32>,
    return
  }
}

</mosaic_0001>

<llo_original>
// kernel: tpu_custom_call.1
$region0: #{tpu_custom_call.1}
  #allocation0 [shape = 'u32[]', space=smem, size = 0x4, offset = 0x4, fixed_abs, tag = 'smem constant byte address 0x4 - core index']
  #allocation1 [shape = 'u32[72,128]{1,0:T(1,128)}', space=vmem, size = 0x9000, scoped, tag = 'internal scratch']
  %s0 = inlined_call_operand.hbm [shape: f32[8,128], index: 0, kind: input, shape index: {}]
  %s1 = inlined_call_operand.hbm [shape: f32[8,128], index: 1, kind: output, shape index: {}]
  %s2 = sld [smem:[#allocation0]]
  $region18: #{tpu_custom_call.1} parent=0
    _
  %s4 = ssub.s32 1, %s2
  %s5 = scalar_select 0, %s4, %s2
  $region1: #{tpu_custom_call.1} parent=0
    #allocation2 [shape = 'u8[4096]{0}', space=vmem, size = 0x1000, scoped, tag = 'input window, operand 0, single buffered']
    #allocation3 [shape = 's32[1]{0}', space=sflag, size = 0x4, scoped, tag = 'scoped memory for tpu_custom_call.1']
    #allocation4 [shape = 's32[1]{0}', space=sflag, size = 0x4, scoped, tag = 'scoped memory for tpu_custom_call.1']
    #allocation5 [shape = 'u8[4096]{0}', space=vmem, size = 0x1000, scoped, tag = 'output window, operand 0, single buffered']
    %6 = vsyncpa [#allocation3], 0
    %7 = vsyncpa [#allocation4], 0
    // Predicated region
    $region2: #{tpu_custom_call.1} parent=1 // pred_check
      _
    $region3: #{tpu_custom_call.1} parent=1 // pred_check_branch
      %9 = sbr.rel (0) target = $region5
    $region4: #{tpu_custom_call.1} parent=1 // pred_region
      %11 = vsyncadd [#allocation3], 0
      %s13 = sshll.u32 %s0, 4
      %s14 = int_to_ptr.hbm [resolvable:$true] %s13
      %s15 = sshll.u32 [#allocation2], 4
      %s16 = int_to_ptr.vmem [resolvable:$true] %s15
      %18 = dma.hbm_to_vmem [thread:$0]  %s14, 128, %s16, [#allocation3]
    $region5: #{tpu_custom_call.1} parent=1 // pred_fallthru
      _
    // Predicated region
    $region6: #{tpu_custom_call.1} parent=1 // pred_check
      _
    $region7: #{tpu_custom_call.1} parent=1 // pred_check_branch
      %20 = sbr.rel (0) target = $region9
    $region8: #{tpu_custom_call.1} parent=1 // pred_region
      %22 = dma.done [#allocation3], 128
    $region9: #{tpu_custom_call.1} parent=1 // pred_fallthru
      _
    %v23 = vld [vmem:[#allocation2] sm:$0xff]
    %v24 = vrot.slane %v23, 7
    %25 = vst [vmem:[#allocation5] sm:$0xff] %v24
    // Predicated region
    $region10: #{tpu_custom_call.1} parent=1 // pred_check
      _
    $region11: #{tpu_custom_call.1} parent=1 // pred_check_branch
      %27 = sbr.rel (0) target = $region13
    $region12: #{tpu_custom_call.1} parent=1 // pred_region
      %29 = vsyncadd [#allocation4], 0
      %s31 = sshll.u32 [#allocation5], 4
      %s32 = int_to_ptr.vmem [resolvable:$true] %s31
      %s33 = sshll.u32 %s1, 4
      %s34 = int_to_ptr.hbm [resolvable:$true] %s33
      %36 = dma.vmem_to_hbm [thread:$0]  %s32, 128, %s34, [#allocation4]
    $region13: #{tpu_custom_call.1} parent=1 // pred_fallthru
      _
    // Predicated region
    $region14: #{tpu_custom_call.1} parent=1 // pred_check
      _
    $region15: #{tpu_custom_call.1} parent=1 // pred_check_branch
      %38 = sbr.rel (0) target = $region17
    $region16: #{tpu_custom_call.1} parent=1 // pred_region
      %40 = dma.done [#allocation4], 128
    $region17: #{tpu_custom_call.1} parent=1 // pred_fallthru
      _
    %41 = vsyncpa [#allocation3], 1
    %42 = vsyncpa [#allocation4], 1

</llo_original>
